<compile_context>
chip_gen: v7x
topology: tpu7x:2x2x1
jax: 0.10.0
libtpu: 0.0.40
codegen_flags: <defaults>
</compile_context>

<pallas_src>
import functools

import jax
import jax.numpy as jnp
from jax.experimental import pallas as pl
from jax.experimental.pallas import tpu as pltpu


def _round_up(x, m):
    return (x + m - 1) // m * m


def _cdiv(a, b):
    return (a + b - 1) // b


def _physical_vmem_bytes():
    try:
        return int(pltpu.get_tpu_info().vmem_capacity_bytes)
    except Exception:
        return 64 * 1024 * 1024  # v7x floor -> safe default on every generation


def _top_kernel(x_ref, scale_ref, shift_ref, wT_ref, b_ref, o_ref, acc_ref,
                *, inv_hw, hw_pad_count):
    # x_ref:     (1, TN, C, THW)  activation tile, HW lane-dense
    # scale_ref: (1, C, 1)        folded BN scale = gamma / sqrt(running_var + eps)
    # shift_ref: (1, C, 1)        folded BN shift = beta  - running_mean * scale
    # wT_ref:    (C, Kpad)        classifier weight^T (native dtype), K padded to 128
    # b_ref:     (1, Kpad)        classifier bias (f32, padded)
    # o_ref:     (1, TN, Kpad)    logits tile (resident across the HW grid axis)
    # acc_ref:   (TN, C)          f32 running spatial sum (VMEM scratch)
    j = pl.program_id(1)

    @pl.when(j == 0)
    def _init():
        acc_ref[...] = jnp.zeros_like(acc_ref)

    # Folded BN + ReLU in f32 (cast-on-load also supports bf16 activations).
    x = x_ref[0].astype(jnp.float32)                       # (TN, C, THW)
    y = jnp.maximum(x * scale_ref[...] + shift_ref[...], 0.0)
    acc_ref[...] += jnp.sum(y, axis=-1)                    # (TN, C)

    @pl.when(j == pl.num_programs(1) - 1)
    def _finalize():
        pooled = acc_ref[...]
        if hw_pad_count:
            # Padded HW lanes are zeros in x, so each contributes relu(shift);
            # subtract the constant once here instead of masking every step.
            relu_shift = jnp.maximum(shift_ref[...], 0.0).reshape(1, -1)  # (1, C)
            pooled = pooled - float(hw_pad_count) * relu_shift
        pooled = pooled * inv_hw                           # divide by TRUE HW
        logits = jnp.dot(pooled.astype(wT_ref.dtype), wT_ref[...],
                         preferred_element_type=jnp.float32)
        o_ref[0] = (logits + b_ref[...]).astype(o_ref.dtype)


def top_forward(x_nchw, gamma, beta, running_mean, running_var, w, b,
                eps=1e-5, *, x_tile_budget_bytes=None):
    """Forward pass of `top`. x_nchw: [N, C, H, W]; w: [K, C]; b: [K] -> [N, K]."""
    N, C, H, W = x_nchw.shape
    K = w.shape[0]
    HW = H * W

    # Fold BN (running stats, inference) into a per-channel affine.
    scale = (gamma.astype(jnp.float32)
             / jnp.sqrt(running_var.astype(jnp.float32) + eps))
    shift = beta.astype(jnp.float32) - running_mean.astype(jnp.float32) * scale

    x_item = jnp.dtype(x_nchw.dtype).itemsize
    w_item = jnp.dtype(w.dtype).itemsize
    Kpad = _round_up(K, 128)

    # ---- per-generation VMEM budget -----------------------------------------
    phys_vmem = _physical_vmem_bytes()
    safe_cap = (phys_vmem * 3) // 4
    # residency of the non-x operands (double-buffered by the pipeline)
    fixed_bytes = 2 * C * Kpad * w_item + 2 * Kpad * 4 + 4 * C * 4
    if x_tile_budget_bytes is None:
        x_tile_target = (16 << 20) if phys_vmem >= (96 << 20) else (8 << 20)
        x_tile_budget = min(x_tile_target,
                            max(128 * 1024, (safe_cap - fixed_bytes) // 2))
    else:
        x_tile_budget = int(x_tile_budget_bytes)

    # ---- tile selection ------------------------------------------------------
    # >=2 batch blocks whenever N >= 2 so both v7x TensorCores get work
    # (harmless on single-TC v5e/v6e). Shrink TN before tiling HW.
    TN = 1 if N <= 1 else min(8, (N + 1) // 2)
    min_thw = HW if HW <= 128 else 128
    while TN > 1 and TN * C * min_thw * x_item > x_tile_budget:
        TN = (TN + 1) // 2
    NB = _cdiv(N, TN)
    N_pad = NB * TN

    if TN * C * HW * x_item <= x_tile_budget:
        THW, HW_pad = HW, HW                 # common case: no HW pad, 1 HW step
    else:
        max_thw = max(128, (x_tile_budget // (TN * C * x_item)) // 128 * 128)
        THW = min(_round_up(HW, 128), max_thw)
        HW_pad = _round_up(HW, THW)
    HWB = HW_pad // THW
    hw_pad_count = HW_pad - HW

    # ---- layout glue (reshapes are free; pad only on the rare tiled path) ----
    x3 = x_nchw.reshape(N, C, HW)
    if N_pad != N or HW_pad != HW:
        x3 = jnp.pad(x3, ((0, N_pad - N), (0, 0), (0, HW_pad - HW)))
    x4 = x3.reshape(NB, TN, C, HW_pad)
    scale3 = scale.reshape(1, C, 1)
    shift3 = shift.reshape(1, C, 1)
    wT = w.T                                      # keep native dtype (bf16 stays bf16)
    if Kpad != K:
        wT = jnp.zeros((C, Kpad), w.dtype).at[:, :K].set(wT)
    b2 = jnp.zeros((1, Kpad), jnp.float32).at[:, :K].set(b.astype(jnp.float32))

    # ---- actual VMEM requirement -> compiler limit ---------------------------
    need = (2 * TN * C * THW * x_item             # x tile, double-buffered
            + fixed_bytes                         # wT / bias / scale / shift
            + 2 * TN * Kpad * 4                   # output tile
            + TN * C * 4)                         # accumulator scratch
    vmem_limit = int(min(max(need * 5 // 4, 16 << 20), phys_vmem - (8 << 20)))

    kernel = functools.partial(_top_kernel, inv_hw=1.0 / HW,
                               hw_pad_count=hw_pad_count)

    out = pl.pallas_call(
        kernel,
        out_shape=jax.ShapeDtypeStruct((NB, TN, Kpad), jnp.float32),
        grid_spec=pltpu.PrefetchScalarGridSpec(
            num_scalar_prefetch=0,
            grid=(NB, HWB),
            in_specs=[
                pl.BlockSpec((1, TN, C, THW), lambda i, j: (i, 0, 0, j)),
                pl.BlockSpec((1, C, 1), lambda i, j: (0, 0, 0)),
                pl.BlockSpec((1, C, 1), lambda i, j: (0, 0, 0)),
                pl.BlockSpec((C, Kpad), lambda i, j: (0, 0)),
                pl.BlockSpec((1, Kpad), lambda i, j: (0, 0)),
            ],
            out_specs=pl.BlockSpec((1, TN, Kpad), lambda i, j: (i, 0, 0)),
            scratch_shapes=[pltpu.VMEM((TN, C), jnp.float32)],
        ),
        compiler_params=pltpu.CompilerParams(
            dimension_semantics=("parallel", "arbitrary"),
            vmem_limit_bytes=vmem_limit,
        ),
    )(x4, scale3, shift3, wT, b2)

    return out.reshape(N_pad, Kpad)[:N, :K]


def _reference(x, gamma, beta, running_mean, running_var, w, b, eps=1e-5):
    scale = gamma / jnp.sqrt(running_var + eps)
    shift = beta - running_mean * scale
    y = jnp.maximum(x * scale[None, :, None, None] + shift[None, :, None, None], 0.0)
    pooled = y.mean(axis=(2, 3))
    return pooled @ w.T + b


def _make_inputs(key, N, C, H, W, K):
    kx, kg, kb, km, kv, kw, kbias = jax.random.split(key, 7)
    x = jax.random.normal(kx, (N, C, H, W), dtype=jnp.float32)
    gamma = 1.0 + 0.1 * jax.random.normal(kg, (C,), dtype=jnp.float32)
    beta = 0.1 * jax.random.normal(kb, (C,), dtype=jnp.float32)
    running_mean = 0.1 * jax.random.normal(km, (C,), dtype=jnp.float32)
    running_var = 1.0 + 0.1 * jnp.abs(jax.random.normal(kv, (C,), dtype=jnp.float32))
    w = 0.1 * jax.random.normal(kw, (K, C), dtype=jnp.float32)
    b = 0.1 * jax.random.normal(kbias, (K,), dtype=jnp.float32)
    return x, gamma, beta, running_mean, running_var, w, b


if __name__ == "__main__":
    import numpy as np

    key = jax.random.PRNGKey(0)
    k1, k2, k3 = jax.random.split(key, 3)

    # Test 1: small shape consistent with the module; single HW step, no pad.
    N, C, H, W, K = 2, 4, 16, 16, 10
    args1 = _make_inputs(k1, N, C, H, W, K)
    logits1 = top_forward(*args1)
    jax.block_until_ready(logits1)
    assert logits1.shape == (N, K) and logits1.dtype == jnp.float32
    np.testing.assert_allclose(np.asarray(logits1), np.asarray(_reference(*args1)),
                               rtol=1e-5, atol=1e-5)

    # Test 2: HW=49 handled WITHOUT padding (full-dim THW), odd batch tile (TN=5).
    N2, C2, H2, W2, K2 = 10, 4, 7, 7, 10
    args2 = _make_inputs(k2, N2, C2, H2, W2, K2)
    logits2 = top_forward(*args2)
    jax.block_until_ready(logits2)
    assert logits2.shape == (N2, K2)
    np.testing.assert_allclose(np.asarray(logits2), np.asarray(_reference(*args2)),
                               rtol=1e-5, atol=1e-5)

    # Test 3: force the HW-tiled path (tiny tile budget) to exercise the
    # multi-step accumulation, batch padding and the finalize pad-correction.
    N3, C3, H3, W3, K3 = 3, 8, 20, 20, 10
    args3 = _make_inputs(k3, N3, C3, H3, W3, K3)
    logits3 = top_forward(*args3, x_tile_budget_bytes=8 * 1024)
    jax.block_until_ready(logits3)
    assert logits3.shape == (N3, K3)
    np.testing.assert_allclose(np.asarray(logits3), np.asarray(_reference(*args3)),
                               rtol=1e-5, atol=1e-5)

    print("KERNEL_OK")
</pallas_src>

<mosaic_0001>
module attributes {stable_mosaic.version = 11 : i64} {
  func.func @_top_kernel(%arg0: i32, %arg1: i32, %arg2: memref<1x1x4x256xf32, #tpu.memory_space<vmem>>, %arg3: memref<1x4x1xf32, #tpu.memory_space<vmem>>, %arg4: memref<1x4x1xf32, #tpu.memory_space<vmem>>, %arg5: memref<4x128xf32, #tpu.memory_space<vmem>>, %arg6: memref<1x128xf32, #tpu.memory_space<vmem>>, %arg7: memref<1x1x128xf32, #tpu.memory_space<vmem>>, %arg8: memref<1x4xf32, #tpu.memory_space<vmem>>) attributes {dimension_semantics = [#tpu.dimension_semantics<parallel>, #tpu.dimension_semantics<arbitrary>], iteration_bounds = array<i64: 2, 1>, scalar_prefetch = 0 : i64, scratch_operands = 1 : i64, tpu.core_type = #tpu.core_type<tc>, window_params = [{transform_indices = @transform_0, window_bounds = array<i64: 1, 1, 4, 256>}, {pipeline_mode = #tpu.pipeline_mode<synchronous>, transform_indices = @transform_1, window_bounds = array<i64: 1, 4, 1>}, {pipeline_mode = #tpu.pipeline_mode<synchronous>, transform_indices = @transform_2, window_bounds = array<i64: 1, 4, 1>}, {pipeline_mode = #tpu.pipeline_mode<synchronous>, transform_indices = @transform_3, window_bounds = array<i64: 4, 128>}, {pipeline_mode = #tpu.pipeline_mode<synchronous>, transform_indices = @transform_4, window_bounds = array<i64: 1, 128>}, {transform_indices = @transform_5, window_bounds = array<i64: 1, 1, 128>}]} {
    %c0_i32 = arith.constant 0 : i32
    %0 = arith.cmpi eq, %arg1, %c0_i32 : i32
    %1 = arith.extui %0 : i1 to i32
    %c0_i32_0 = arith.constant 0 : i32
    %2 = arith.cmpi ne, %1, %c0_i32_0 : i32
    scf.if %2 {
      %cst_17 = arith.constant 0.000000e+00 : f32
      %20 = vector.broadcast %cst_17 : f32 to vector<1x4xf32>
      %c0_18 = arith.constant 0 : index
      %c0_19 = arith.constant 0 : index
      %21 = vector.load %arg8[%c0_18, %c0_19] : memref<1x4xf32, #tpu.memory_space<vmem>>, vector<1x4xf32>
      tpu.vector_store %arg8[%c0_18, %c0_19], %20 {strides = array<i32>} : memref<1x4xf32, #tpu.memory_space<vmem>>, vector<1x4xf32>,
    } else {
    }
    %c0 = arith.constant 0 : index
    %c0_1 = arith.constant 0 : index
    %c0_2 = arith.constant 0 : index
    %c0_3 = arith.constant 0 : index
    %3 = vector.load %arg2[%c0, %c0_1, %c0_2, %c0_3] : memref<1x1x4x256xf32, #tpu.memory_space<vmem>>, vector<1x1x4x256xf32>
    %4 = vector.shape_cast %3 : vector<1x1x4x256xf32> to vector<1x4x256xf32>
    %c0_4 = arith.constant 0 : index
    %c0_5 = arith.constant 0 : index
    %c0_6 = arith.constant 0 : index
    %5 = vector.load %arg3[%c0_4, %c0_5, %c0_6] : memref<1x4x1xf32, #tpu.memory_space<vmem>>, vector<1x4x1xf32>
    %6 = vector.broadcast %5 : vector<1x4x1xf32> to vector<1x4x256xf32>
    %7 = arith.mulf %4, %6 : vector<1x4x256xf32>
    %c0_7 = arith.constant 0 : index
    %c0_8 = arith.constant 0 : index
    %c0_9 = arith.constant 0 : index
    %8 = vector.load %arg4[%c0_7, %c0_8, %c0_9] : memref<1x4x1xf32, #tpu.memory_space<vmem>>, vector<1x4x1xf32>
    %9 = vector.broadcast %8 : vector<1x4x1xf32> to vector<1x4x256xf32>
    %10 = arith.addf %7, %9 : vector<1x4x256xf32>
    %cst = arith.constant 0.000000e+00 : f32
    %11 = vector.broadcast %cst : f32 to vector<1x4x256xf32>
    %12 = arith.maximumf %10, %11 : vector<1x4x256xf32>
    %c0_10 = arith.constant 0 : index
    %c0_11 = arith.constant 0 : index
    %13 = vector.load %arg8[%c0_10, %c0_11] : memref<1x4xf32, #tpu.memory_space<vmem>>, vector<1x4xf32>
    %cst_12 = arith.constant dense<0.000000e+00> : vector<1x4xf32>
    %14 = vector.multi_reduction <add>, %12, %cst_12 [2] : vector<1x4x256xf32> to vector<1x4xf32>
    %15 = arith.addf %13, %14 : vector<1x4xf32>
    %c0_13 = arith.constant 0 : index
    %c0_14 = arith.constant 0 : index
    %16 = vector.load %arg8[%c0_13, %c0_14] : memref<1x4xf32, #tpu.memory_space<vmem>>, vector<1x4xf32>
    tpu.vector_store %arg8[%c0_13, %c0_14], %15 {strides = array<i32>} : memref<1x4xf32, #tpu.memory_space<vmem>>, vector<1x4xf32>,
    %c0_i32_15 = arith.constant 0 : i32
    %17 = arith.cmpi eq, %arg1, %c0_i32_15 : i32
    %18 = arith.extui %17 : i1 to i32
    %c0_i32_16 = arith.constant 0 : i32
    %19 = arith.cmpi ne, %18, %c0_i32_16 : i32
    scf.if %19 {
      %c0_17 = arith.constant 0 : index
      %c0_18 = arith.constant 0 : index
      %20 = vector.load %arg8[%c0_17, %c0_18] : memref<1x4xf32, #tpu.memory_space<vmem>>, vector<1x4xf32>
      %cst_19 = arith.constant 3.906250e-03 : f32
      %21 = vector.broadcast %cst_19 : f32 to vector<1x4xf32>
      %22 = arith.mulf %20, %21 : vector<1x4xf32>
      %c0_20 = arith.constant 0 : index
      %c0_21 = arith.constant 0 : index
      %23 = vector.load %arg5[%c0_20, %c0_21] : memref<4x128xf32, #tpu.memory_space<vmem>>, vector<4x128xf32>
      %cst_22 = arith.constant dense<0.000000e+00> : vector<1x128xf32>
      %24 = tpu.matmul %22, %23, %cst_22 {dimension_numbers = #tpu.dot_dimension_numbers<[1], [0], [0], [1], [0, 0, 1, 1], [], []>} : vector<1x4xf32>, vector<4x128xf32>, vector<1x128xf32> -> vector<1x128xf32>
      %c0_23 = arith.constant 0 : index
      %c0_24 = arith.constant 0 : index
      %25 = vector.load %arg6[%c0_23, %c0_24] : memref<1x128xf32, #tpu.memory_space<vmem>>, vector<1x128xf32>
      %26 = arith.addf %24, %25 : vector<1x128xf32>
      %c0_25 = arith.constant 0 : index
      %c0_26 = arith.constant 0 : index
      %c0_27 = arith.constant 0 : index
      %27 = vector.load %arg7[%c0_25, %c0_26, %c0_27] : memref<1x1x128xf32, #tpu.memory_space<vmem>>, vector<1x1x128xf32>
      %28 = vector.shape_cast %27 : vector<1x1x128xf32> to vector<1x128xf32>
      %29 = vector.shape_cast %26 : vector<1x128xf32> to vector<1x1x128xf32>
      tpu.vector_store %arg7[%c0_25, %c0_26, %c0_27], %29 {strides = array<i32>} : memref<1x1x128xf32, #tpu.memory_space<vmem>>, vector<1x1x128xf32>,
    } else {
    }
    return
  }
  func.func @transform_0(%arg0: i32, %arg1: i32) -> (i32, i32, i32, i32) {
    %c0_i32 = arith.constant 0 : i32
    %c0_i32_0 = arith.constant 0 : i32
    %c0_i32_1 = arith.constant 0 : i32
    return %arg0, %c0_i32, %c0_i32_0, %arg1 : i32, i32, i32, i32
  }
  func.func @transform_1(%arg0: i32, %arg1: i32) -> (i32, i32, i32) {
    %c0_i32 = arith.constant 0 : i32
    %c0_i32_0 = arith.constant 0 : i32
    %c0_i32_1 = arith.constant 0 : i32
    %c0_i32_2 = arith.constant 0 : i32
    return %c0_i32, %c0_i32_0, %c0_i32_1 : i32, i32, i32
  }
  func.func @transform_2(%arg0: i32, %arg1: i32) -> (i32, i32, i32) {
    %c0_i32 = arith.constant 0 : i32
    %c0_i32_0 = arith.constant 0 : i32
    %c0_i32_1 = arith.constant 0 : i32
    %c0_i32_2 = arith.constant 0 : i32
    return %c0_i32, %c0_i32_0, %c0_i32_1 : i32, i32, i32
  }
  func.func @transform_3(%arg0: i32, %arg1: i32) -> (i32, i32) {
    %c0_i32 = arith.constant 0 : i32
    %c0_i32_0 = arith.constant 0 : i32
    %c0_i32_1 = arith.constant 0 : i32
    return %c0_i32, %c0_i32_0 : i32, i32
  }
  func.func @transform_4(%arg0: i32, %arg1: i32) -> (i32, i32) {
    %c0_i32 = arith.constant 0 : i32
    %c0_i32_0 = arith.constant 0 : i32
    %c0_i32_1 = arith.constant 0 : i32
    return %c0_i32, %c0_i32_0 : i32, i32
  }
  func.func @transform_5(%arg0: i32, %arg1: i32) -> (i32, i32, i32) {
    %c0_i32 = arith.constant 0 : i32
    %c0_i32_0 = arith.constant 0 : i32
    %c0_i32_1 = arith.constant 0 : i32
    return %arg0, %c0_i32, %c0_i32_0 : i32, i32, i32
  }
}

</mosaic_0001>

<llo_original>
// kernel: tpu_custom_call.1
$region0: #{tpu_custom_call.1}
  #allocation0 [shape = 'u32[]', space=smem, size = 0x4, offset = 0x4, fixed_abs, tag = 'smem constant byte address 0x4 - core index']
  #allocation1 [shape = 'u32[144,128]{1,0:T(1,128)}', space=vmem, size = 0x12000, scoped, tag = 'internal scratch']
  #allocation2 [shape = 'f32[1,4]{1,0:T(1,128)}', space=vmem, size = 0x200, scoped, tag = 'scratch operand']
  %s0 = inlined_call_operand.hbm [shape: f32[2,1,4,256], index: 0, kind: input, shape index: {}]
  %s1 = inlined_call_operand.vmem [shape: f32[1,4,1], index: 1, kind: input, shape index: {}]
  %s2 = inlined_call_operand.vmem [shape: f32[1,4,1], index: 2, kind: input, shape index: {}]
  %s3 = inlined_call_operand.vmem [shape: f32[4,128], index: 3, kind: input, shape index: {}]
  %s4 = inlined_call_operand.vmem [shape: f32[1,128], index: 4, kind: input, shape index: {}]
  %s5 = inlined_call_operand.hbm [shape: f32[2,1,128], index: 5, kind: output, shape index: {}]
  %s6 = sld [smem:[#allocation0]]
  $region65: #{tpu_custom_call.1} parent=0
    _
  %s8 = ssub.s32 1, %s6
  %s9 = scalar_select 0, %s8, %s6
  $region1: #{tpu_custom_call.1} parent=0
    #allocation3 [shape = 'u8[8192]{0}', space=vmem, size = 0x2000, scoped, tag = 'input window, operand 0']
    #allocation4 [shape = 's32[2]{0}', space=sflag, size = 0x8, scoped, tag = 'scoped memory for tpu_custom_call.1']
    #allocation5 [shape = 's32[2]{0}', space=sflag, size = 0x8, scoped, tag = 'scoped memory for tpu_custom_call.1']
    #allocation6 [shape = 'u8[1024]{0}', space=vmem, size = 0x400, scoped, tag = 'output window, operand 0']
    %10 = vsyncpa [#allocation4], 0
    %s11 = scalar_lea.sflag [#allocation4], 1
    %12 = vsyncpa %s11, 0
    %13 = vsyncpa [#allocation5], 0
    %s14 = scalar_lea.sflag [#allocation5], 1
    %15 = vsyncpa %s14, 0
    loop: start=0, step=1, limit=4
    $region2: #{tpu_custom_call.1} parent=1 // loop_pre_header
      _
    $region3: #{tpu_custom_call.1} parent=1 // loop_header
      %s17 = sphi 0, %s21
      %p18 = scmp.ge.s32.totalorder %s17, 4
      %s24 = sphi 0, %s36
      %s25 = sphi 0, %s32
      %s26 = sphi 0, %s24
      %s27 = sphi 0, %s25
      %s28 = sphi 0, %s26
      %s29 = sphi 0, %s27
      %s41 = sphi 0, %s43
      %s44 = sphi 0, %s41
      %s45 = sphi 0, %s44
      %s61 = sphi 0, %s45
      %s65 = sphi 0, %s65
      %s67 = sphi 0, %s65
      %s68 = sphi 0, %s67
      %s82 = sphi 0, %s68
      %s86 = sphi 0, %s86
      %s88 = sphi 0, %s86
      %s89 = sphi 0, %s88
      %s103 = sphi 0, %s89
      %s107 = sphi 0, %s107
      %s109 = sphi 0, %s107
      %s110 = sphi 0, %s109
      %s124 = sphi 0, %s110
      %s128 = sphi 0, %s128
      %s130 = sphi 0, %s128
      %s131 = sphi 0, %s130
      %s145 = sphi 0, %s131
      %s151 = sphi 0, %s153
      %s154 = sphi 0, %s151
      %s155 = sphi 0, %s154
      %s171 = sphi 0, %s155
    $region4: #{tpu_custom_call.1} parent=1 // loop_header_branch
      %20 = sbr.rel (%p18) target = $region8
    $region5: #{tpu_custom_call.1} parent=1 // loop_body
      %s22 = ssub.s32 %s17, 1
      %s23 = ssub.s32 %s17, 2
      %s30 = sadd.s32 1, %s25
      %p31 = scmp.ge.s32.totalorder %s30, 1
      %s32 = scalar_select %p31, 0, %s30
      %s33 = sadd.s32 1, %s24
      %s34 = scalar_select %p31, %s33, %s24
      %p35 = scmp.ge.s32.totalorder %s34, 2
      %s36 = scalar_select %p35, 0, %s34
      %s37 = ssub.s32 %s24, %s36
      %s38 = ssub.s32 %s25, %s32
      %s39 = sor.u32 %s37, %s38
      %p40 = scmp.eq.s32.totalorder %s39, 0
      %s42 = sadd.s32 %s41, 1
      %s43 = scalar_select %p40, %s41, %s42
      %p46 = pneg %p40
      %p47 = scmp.eq.s32.totalorder %s17, 1
      %p48 = por %p46, %p47
      %p49 = scmp.ne.s32.totalorder %s41, %s44
      %p50 = scmp.eq.s32.totalorder %s17, 0
      %p51 = por %p49, %p50
      %p52 = scmp.ne.s32.totalorder %s41, %s44
      %p53 = scmp.eq.s32.totalorder %s22, 1
      %p54 = por %p52, %p53
      %p55 = scmp.ne.s32.totalorder %s44, %s45
      %p56 = scmp.eq.s32.totalorder %s22, 0
      %p57 = por %p55, %p56
      %p58 = scmp.ne.s32.totalorder %s44, %s45
      %p59 = scmp.eq.s32.totalorder %s23, 1
      %p60 = por %p58, %p59
      %p62 = scmp.ne.s32.totalorder %s45, %s61
      %p63 = scmp.eq.s32.totalorder %s23, 0
      %p64 = por %p62, %p63
      %s66 = sadd.s32 %s65, 1
      %p69 = scmp.eq.s32.totalorder %s17, 1
      %p70 = scmp.ne.s32.totalorder %s65, %s67
      %p71 = scmp.eq.s32.totalorder %s17, 0
      %p72 = por %p70, %p71
      %p73 = scmp.ne.s32.totalorder %s65, %s67
      %p74 = scmp.eq.s32.totalorder %s22, 1
      %p75 = por %p73, %p74
      %p76 = scmp.ne.s32.totalorder %s67, %s68
      %p77 = scmp.eq.s32.totalorder %s22, 0
      %p78 = por %p76, %p77
      %p79 = scmp.ne.s32.totalorder %s67, %s68
      %p80 = scmp.eq.s32.totalorder %s23, 1
      %p81 = por %p79, %p80
      %p83 = scmp.ne.s32.totalorder %s68, %s82
      %p84 = scmp.eq.s32.totalorder %s23, 0
      %p85 = por %p83, %p84
      %s87 = sadd.s32 %s86, 1
      %p90 = scmp.eq.s32.totalorder %s17, 1
      %p91 = scmp.ne.s32.totalorder %s86, %s88
      %p92 = scmp.eq.s32.totalorder %s17, 0
      %p93 = por %p91, %p92
      %p94 = scmp.ne.s32.totalorder %s86, %s88
      %p95 = scmp.eq.s32.totalorder %s22, 1
      %p96 = por %p94, %p95
      %p97 = scmp.ne.s32.totalorder %s88, %s89
      %p98 = scmp.eq.s32.totalorder %s22, 0
      %p99 = por %p97, %p98
      %p100 = scmp.ne.s32.totalorder %s88, %s89
      %p101 = scmp.eq.s32.totalorder %s23, 1
      %p102 = por %p100, %p101
      %p104 = scmp.ne.s32.totalorder %s89, %s103
      %p105 = scmp.eq.s32.totalorder %s23, 0
      %p106 = por %p104, %p105
      %s108 = sadd.s32 %s107, 1
      %p111 = scmp.eq.s32.totalorder %s17, 1
      %p112 = scmp.ne.s32.totalorder %s107, %s109
      %p113 = scmp.eq.s32.totalorder %s17, 0
      %p114 = por %p112, %p113
      %p115 = scmp.ne.s32.totalorder %s107, %s109
      %p116 = scmp.eq.s32.totalorder %s22, 1
      %p117 = por %p115, %p116
      %p118 = scmp.ne.s32.totalorder %s109, %s110
      %p119 = scmp.eq.s32.totalorder %s22, 0
      %p120 = por %p118, %p119
      %p121 = scmp.ne.s32.totalorder %s109, %s110
      %p122 = scmp.eq.s32.totalorder %s23, 1
      %p123 = por %p121, %p122
      %p125 = scmp.ne.s32.totalorder %s110, %s124
      %p126 = scmp.eq.s32.totalorder %s23, 0
      %p127 = por %p125, %p126
      %s129 = sadd.s32 %s128, 1
      %p132 = scmp.eq.s32.totalorder %s17, 1
      %p133 = scmp.ne.s32.totalorder %s128, %s130
      %p134 = scmp.eq.s32.totalorder %s17, 0
      %p135 = por %p133, %p134
      %p136 = scmp.ne.s32.totalorder %s128, %s130
      %p137 = scmp.eq.s32.totalorder %s22, 1
      %p138 = por %p136, %p137
      %p139 = scmp.ne.s32.totalorder %s130, %s131
      %p140 = scmp.eq.s32.totalorder %s22, 0
      %p141 = por %p139, %p140
      %p142 = scmp.ne.s32.totalorder %s130, %s131
      %p143 = scmp.eq.s32.totalorder %s23, 1
      %p144 = por %p142, %p143
      %p146 = scmp.ne.s32.totalorder %s131, %s145
      %p147 = scmp.eq.s32.totalorder %s23, 0
      %p148 = por %p146, %p147
      %s149 = ssub.s32 %s24, %s36
      %p150 = scmp.eq.s32.totalorder %s149, 0
      %s152 = sadd.s32 %s151, 1
      %s153 = scalar_select %p150, %s151, %s152
      %p156 = pneg %p150
      %p157 = scmp.eq.s32.totalorder %s17, 1
      %p158 = por %p156, %p157
      %p159 = scmp.ne.s32.totalorder %s151, %s154
      %p160 = scmp.eq.s32.totalorder %s17, 0
      %p161 = por %p159, %p160
      %p162 = scmp.ne.s32.totalorder %s151, %s154
      %p163 = scmp.eq.s32.totalorder %s22, 1
      %p164 = por %p162, %p163
      %p165 = scmp.ne.s32.totalorder %s154, %s155
      %p166 = scmp.eq.s32.totalorder %s22, 0
      %p167 = por %p165, %p166
      %p168 = scmp.ne.s32.totalorder %s154, %s155
      %p169 = scmp.eq.s32.totalorder %s23, 1
      %p170 = por %p168, %p169
      %p172 = scmp.ne.s32.totalorder %s155, %s171
      %p173 = scmp.eq.s32.totalorder %s23, 0
      %p174 = por %p172, %p173
      %p175 = scmp.le.s32.totalorder 1, %s17
      %p176 = scmp.lt.s32.totalorder %s17, 3
      %p177 = pnand %p175, %p176
      %p178 = pneg %p177
      // Predicated region
      $region9: #{tpu_custom_call.1} parent=5 // pred_check
        _
      $region10: #{tpu_custom_call.1} parent=5 // pred_check_branch
        %180 = sbr.rel (%p177) target = $region12
      $region11: #{tpu_custom_call.1} parent=5 // pred_region
        %s181 = ssub.s32 %s17, 1
        // Predicated region
        $region13: #{tpu_custom_call.1} parent=11 // pred_check
          %p182 = pneg %p78
        $region14: #{tpu_custom_call.1} parent=11 // pred_check_branch
          %184 = sbr.rel (%p182) target = $region16
        $region15: #{tpu_custom_call.1} parent=11 // pred_region
          _
        $region16: #{tpu_custom_call.1} parent=11 // pred_fallthru
          _
        // Predicated region
        $region17: #{tpu_custom_call.1} parent=11 // pred_check
          %p185 = pneg %p99
        $region18: #{tpu_custom_call.1} parent=11 // pred_check_branch
          %187 = sbr.rel (%p185) target = $region20
        $region19: #{tpu_custom_call.1} parent=11 // pred_region
          _
        $region20: #{tpu_custom_call.1} parent=11 // pred_fallthru
          _
        // Predicated region
        $region21: #{tpu_custom_call.1} parent=11 // pred_check
          %p188 = pneg %p120
        $region22: #{tpu_custom_call.1} parent=11 // pred_check_branch
          %190 = sbr.rel (%p188) target = $region24
        $region23: #{tpu_custom_call.1} parent=11 // pred_region
          _
        $region24: #{tpu_custom_call.1} parent=11 // pred_fallthru
          _
        // Predicated region
        $region25: #{tpu_custom_call.1} parent=11 // pred_check
          %p191 = pneg %p141
        $region26: #{tpu_custom_call.1} parent=11 // pred_check_branch
          %193 = sbr.rel (%p191) target = $region28
        $region27: #{tpu_custom_call.1} parent=11 // pred_region
          _
        $region28: #{tpu_custom_call.1} parent=11 // pred_fallthru
          _
      $region12: #{tpu_custom_call.1} parent=5 // pred_fallthru
        _
      %p194 = scmp.lt.s32.totalorder %s17, 2
      // Predicated region
      $region29: #{tpu_custom_call.1} parent=5 // pred_check
        %p195 = pneg %p194
      $region30: #{tpu_custom_call.1} parent=5 // pred_check_branch
        %197 = sbr.rel (%p195) target = $region32
      $region31: #{tpu_custom_call.1} parent=5 // pred_region
        // Predicated region
        $region33: #{tpu_custom_call.1} parent=31 // pred_check
          %p198 = pneg %p51
        $region34: #{tpu_custom_call.1} parent=31 // pred_check_branch
          %200 = sbr.rel (%p198) target = $region36
        $region35: #{tpu_custom_call.1} parent=31 // pred_region
          %s201 = sand.u32 %s41, 1
          %s202 = scalar_lea.sflag [#allocation4], %s201
          %s203 = sand.u32 %s41, 1
          %s204 = smul.addr %s203, 8
          %s205 = scalar_lea.vmem [#allocation3], %s204
          %s206 = smul.u32 2, %s25
          %s208 = ssub.s32 128, 128
          %209 = vsyncadd %s202, %s208
          %s210 = smul.addr %s24, 2
          %s211 = sadd.s32 %s206, %s210
          %s212 = smul.addr %s211, 64
          %s213 = scalar_lea.hbm %s0, %s212
          %s215 = sshll.u32 %s205, 4
          %s216 = int_to_ptr.vmem [resolvable:$true] %s215
          %218 = dma.hbm_to_vmem [thread:$0]  %s213, 128, %s216, %s202
        $region36: #{tpu_custom_call.1} parent=31 // pred_fallthru
          _
      $region32: #{tpu_custom_call.1} parent=5 // pred_fallthru
        _
      %p219 = scmp.le.s32.totalorder 1, %s17
      %p220 = scmp.lt.s32.totalorder %s17, 3
      %p221 = pnand %p219, %p220
      %p222 = pneg %p221
      // Predicated region
      $region37: #{tpu_custom_call.1} parent=5 // pred_check
        _
      $region38: #{tpu_custom_call.1} parent=5 // pred_check_branch
        %224 = sbr.rel (%p221) target = $region40
      $region39: #{tpu_custom_call.1} parent=5 // pred_region
        %s225 = ssub.s32 %s17, 1
        %s226 = sand.u32 %s44, 1
        %s227 = scalar_lea.sflag [#allocation4], %s226
        %s228 = sand.u32 %s44, 1
        %s229 = smul.addr %s228, 8
        %s230 = scalar_lea.vmem [#allocation3], %s229
        // Predicated region
        $region41: #{tpu_custom_call.1} parent=39 // pred_check
          %p231 = pneg %p57
        $region42: #{tpu_custom_call.1} parent=39 // pred_check_branch
          %233 = sbr.rel (%p231) target = $region44
        $region43: #{tpu_custom_call.1} parent=39 // pred_region
          %234 = dma.done %s227, 128
        $region44: #{tpu_custom_call.1} parent=39 // pred_fallthru
          _
        %s235 = sand.u32 %s44, 1
        %s236 = scalar_lea.sflag [#allocation4], %s235
        %s237 = sand.u32 %s44, 1
        %s238 = smul.addr %s237, 8
        %s239 = scalar_lea.vmem [#allocation3], %s238
        %p240 = pneg %p57
        %p241 = pneg %p54
        %p242 = pneg %p78
        %p243 = pneg %p75
        %p244 = pneg %p99
        %p245 = pneg %p96
        %p246 = pneg %p120
        %p247 = pneg %p117
        %p248 = pneg %p141
        %p249 = pneg %p138
        %p250 = pneg %p167
        %p251 = pneg %p164
        %s252 = sand.u32 %s154, 1
        %s253 = scalar_lea.sflag [#allocation5], %s252
        %s254 = sand.u32 %s154, 1
        %s255 = scalar_lea.vmem [#allocation6], %s254
        %s256 = smul.u32 2, %s27
        %p257 = scmp.eq.s32.totalorder %s27, 0
        // Predicated region
        $region45: #{tpu_custom_call.1} parent=39 // pred_check
          %p258 = pneg %p257
        $region46: #{tpu_custom_call.1} parent=39 // pred_check_branch
          %260 = sbr.rel (%p258) target = $region48
        $region47: #{tpu_custom_call.1} parent=39 // pred_region
          %vm261 = vcmask 24576
          %262 = vst.msk [vmem:[#allocation2] sm:$0x1] %vm261, 0.0
        $region48: #{tpu_custom_call.1} parent=39 // pred_fallthru
          _
        %v263 = vld [vmem:[%s230] sm:$0xff]
        %v264 = vld [vmem:[%s1] sm:$0xf]
        %266 = vset.pattern.permute.xlu0 0
        %267 = vperm.xlu0 %266, %v264
        %v268 = vpop.permute.xlu0 %267
        %v270 = vunpack.c.l.s4 839922192
        %v271 = vunpack.c.0.s8 %v270
        %v272 = vlaneseq
        %v273 = vshrl.u32 %v272, 7
        %v274 = vsub.s32 %v271, %v273
        %v275 = vrot.slane %v268, %v274
        %v277 = vmul.f32 %v263, %v275
        %v278 = vld [vmem:[%s2] sm:$0xf]
        %280 = vset.pattern.permute.xlu0 0
        %281 = vperm.xlu0 %280, %v278
        %v282 = vpop.permute.xlu0 %281
        %v284 = vunpack.c.l.s4 839922192
        %v285 = vunpack.c.0.s8 %v284
        %v286 = vlaneseq
        %v287 = vshrl.u32 %v286, 7
        %v288 = vsub.s32 %v285, %v287
        %v289 = vrot.slane %v282, %v288
        %v291 = vadd.f32 %v277, %v289
        %v292 = vmax.f32 %v291, 0.0
        %v293 = vld [vmem:[#allocation2] sm:$0x1]
        %v295 = vcombine.high %v292, %v292
        %vm297 = vcmask 1043456
        %v298 = vsel %vm297, %v292, 0.0
        %v299 = vsel %vm297, %v295, 0.0
        %v300 = vadd.f32 %v298, %v299
        %301 = vadd.xlane.f32.xlu0 %v300
        %v302 = vpop.xlane.xlu0 %301
        %v304 = vlaneseq
        %v305 = vshrl.u32 %v304, 7
        %v306 = vsub.s32 0, %v305
        %v307 = vrot.slane %v302, %v306
        %v308 = vlaneseq
        %v309 = vshrl.u32 %v308, 7
        %v310 = vsub.s32 1, %v309
        %v311 = vrot.slane %v302, %v310
        %v312 = vlaneseq
        %v313 = vshrl.u32 %v312, 7
        %v314 = vsub.s32 2, %v313
        %v315 = vrot.slane %v302, %v314
        %v316 = vlaneseq
        %v317 = vshrl.u32 %v316, 7
        %v318 = vsub.s32 3, %v317
        %v319 = vrot.slane %v302, %v318
        %v320 = vcombine.low %v307, %v311
        %v321 = vcombine.low %v315, %v319
        %v323 = vunpack.c.l.s4 1966171168
        %v324 = vunpack.c.0.s8 %v323
        %v325 = vlaneseq
        %v326 = vshrl.u32 %v325, 7
        %v327 = vsub.s32 %v324, %v326
        %v328 = vrot.slane %v320, %v327
        %v330 = vunpack.c.l.s4 1966171168
        %v331 = vunpack.c.0.s8 %v330
        %v332 = vlaneseq
        %v333 = vshrl.u32 %v332, 7
        %v334 = vsub.s32 %v331, %v333
        %v335 = vrot.slane %v321, %v334
        %v336 = vcombine.low %v328, %v335
        %v338 = vunpack.c.l.s4 1966171168
        %v339 = vunpack.c.0.s8 %v338
        %v340 = vlaneseq
        %v341 = vshrl.u32 %v340, 7
        %v342 = vsub.s32 %v339, %v341
        %v343 = vrot.slane %v336, %v342
        %344 = vset.pattern.permute.xlu0 0
        %345 = vperm.xlu0 %344, %v343
        %v346 = vpop.permute.xlu0 %345
        %v347 = vlaneseq
        %v348 = vand.u32 %v347, 127
        %v349 = vlaneseq
        %v350 = vshrl.u32 %v349, 7
        %v351 = vsub.s32 %v348, %v350
        %v352 = vrot.slane %v346, %v351
        %v354 = vunpack.c.l.s4 1966171168
        %v355 = vunpack.c.0.s8 %v354
        %v356 = vlaneseq
        %v357 = vshrl.u32 %v356, 7
        %v358 = vsub.s32 %v355, %v357
        %v359 = vrot.slane %v352, %v358
        %v361 = vunpack.c.l.s4 1966171168
        %v362 = vunpack.c.0.s8 %v361
        %v363 = vlaneseq
        %v364 = vshrl.u32 %v363, 7
        %v365 = vsub.s32 %v362, %v364
        %v366 = vrot.slane %v359, %v365
        %v368 = vadd.f32 %v293, %v366
        %vm369 = vcmask 24576
        %370 = vst.msk [vmem:[#allocation2] sm:$0x1] %vm369, %v368
        // Predicated region
        $region49: #{tpu_custom_call.1} parent=39 // pred_check
          %p371 = pneg %p257
        $region50: #{tpu_custom_call.1} parent=39 // pred_check_branch
          %373 = sbr.rel (%p371) target = $region52
        $region51: #{tpu_custom_call.1} parent=39 // pred_region
          %v374 = vld [vmem:[#allocation2] sm:$0x1]
          %v375 = vmul.f32 %v374, 0.00390625
          %v376 = vld [vmem:[%s3] sm:$0xf]
          %v377 = vld [vmem:[%s4] sm:$0x1]
          %vm378 = vcmask 31744
          %v380 = vsel %vm378, %v375, 0
          %v383 = vsel %vm297, %v376, 0
          %385 = vmatprep.subr.mxu0 0.0
          %386 = vmatpush1.msra.mxu0 %v383
          %387 = vmatprep.subr.mxu0 0.0
          %388 = vmatpush1.msra.mxu0 0.0
          %389 = vmatprep.subr.mxu0 0.0
          %390 = vmatpush1.msra.mxu0 0.0
          %391 = vmatprep.subr.mxu0 0.0
          %392 = vmatpush1.msra.mxu0 0.0
          %393 = vmatprep.subr.mxu0 0.0
          %394 = vmatpush1.msra.mxu0 0.0
          %395 = vmatprep.subr.mxu0 0.0
          %396 = vmatpush1.msra.mxu0 0.0
          %397 = vmatprep.subr.mxu0 0.0
          %398 = vmatpush1.msra.mxu0 0.0
          %399 = vmatprep.subr.mxu0 0.0
          %400 = vmatpush1.msra.mxu0 0.0
          %401 = vmatprep.subr.mxu0 0.0
          %402 = vmatpush1.msra.mxu0 0.0
          %403 = vmatprep.subr.mxu0 0.0
          %404 = vmatpush1.msra.mxu0 0.0
          %405 = vmatprep.subr.mxu0 0.0
          %406 = vmatpush1.msra.mxu0 0.0
          %407 = vmatprep.subr.mxu0 0.0
          %408 = vmatpush1.msra.mxu0 0.0
          %409 = vmatprep.subr.mxu0 0.0
          %410 = vmatpush1.msra.mxu0 0.0
          %411 = vmatprep.subr.mxu0 0.0
          %412 = vmatpush1.msra.mxu0 0.0
          %413 = vmatprep.subr.mxu0 0.0
          %414 = vmatpush1.msra.mxu0 0.0
          %415 = vmatprep.subr.mxu0 0.0
          %416 = vmatpush1.msra.mxu0 0.0
          %417 = vmatprep.subr.mxu0 0.0
          %418 = vmatpush1.msra.mxu0 0.0
          %419 = vmatprep.subr.mxu0 0.0
          %420 = vmatpush1.msra.mxu0 0.0
          %421 = vmatprep.subr.mxu0 0.0
          %422 = vmatpush1.msra.mxu0 0.0
          %423 = vmatprep.subr.mxu0 0.0
          %424 = vmatpush1.msra.mxu0 0.0
          %425 = vmatprep.subr.mxu0 0.0
          %426 = vmatpush1.msra.mxu0 0.0
          %427 = vmatprep.subr.mxu0 0.0
          %428 = vmatpush1.msra.mxu0 0.0
          %429 = vmatprep.subr.mxu0 0.0
          %430 = vmatpush1.msra.mxu0 0.0
          %431 = vmatprep.subr.mxu0 0.0
          %432 = vmatpush1.msra.mxu0 0.0
          %433 = vmatprep.subr.mxu0 0.0
          %434 = vmatpush1.msra.mxu0 0.0
          %435 = vmatprep.subr.mxu0 0.0
          %436 = vmatpush1.msra.mxu0 0.0
          %437 = vmatprep.subr.mxu0 0.0
          %438 = vmatpush1.msra.mxu0 0.0
          %439 = vmatprep.subr.mxu0 0.0
          %440 = vmatpush1.msra.mxu0 0.0
          %441 = vmatprep.subr.mxu0 0.0
          %442 = vmatpush1.msra.mxu0 0.0
          %443 = vmatprep.subr.mxu0 0.0
          %444 = vmatpush1.msra.mxu0 0.0
          %445 = vmatprep.subr.mxu0 0.0
          %446 = vmatpush1.msra.mxu0 0.0
          %447 = vmatprep.subr.mxu0 0.0
          %448 = vmatpush1.msra.mxu0 0.0
          %449 = vmatprep.mubr.f32.mxu0 0.0
          %450 = vmatmul.mubr.f32.gmra.mrb[0].mxu0 %v380
          %v451 = vpop.f32.mrb[0].mxu0
          %v452 = vadd.f32 %v377, %v451
          %v453 = vpop.f32.mrb[0].mxu0
          %454 = vdwg.mxu0
          %455 = vst [vmem:[%s255] sm:$0x1] %v452
        $region52: #{tpu_custom_call.1} parent=39 // pred_fallthru
          _
        %s456 = sand.u32 %s154, 1
        %s457 = scalar_lea.sflag [#allocation5], %s456
        %s458 = sand.u32 %s154, 1
        %s459 = scalar_lea.vmem [#allocation6], %s458
        // Predicated region
        $region53: #{tpu_custom_call.1} parent=39 // pred_check
          %p460 = pneg %p164
        $region54: #{tpu_custom_call.1} parent=39 // pred_check_branch
          %462 = sbr.rel (%p460) target = $region56
        $region55: #{tpu_custom_call.1} parent=39 // pred_region
          %s464 = ssub.s32 16, 16
          %465 = vsyncadd %s457, %s464
          %s466 = smul.addr %s26, 16
          %s467 = scalar_lea.hbm %s5, %s466
          %s469 = sshll.u32 %s459, 4
          %s470 = int_to_ptr.vmem [resolvable:$true] %s469
          %472 = dma.vmem_to_hbm [thread:$0]  %s470, 16, %s467, %s457
        $region56: #{tpu_custom_call.1} parent=39 // pred_fallthru
          _
      $region40: #{tpu_custom_call.1} parent=5 // pred_fallthru
        _
      %p473 = scmp.le.s32.totalorder 2, %s17
      // Predicated region
      $region57: #{tpu_custom_call.1} parent=5 // pred_check
        %p474 = pneg %p473
      $region58: #{tpu_custom_call.1} parent=5 // pred_check_branch
        %476 = sbr.rel (%p474) target = $region60
      $region59: #{tpu_custom_call.1} parent=5 // pred_region
        %s477 = ssub.s32 %s17, 2
        // Predicated region
        $region61: #{tpu_custom_call.1} parent=59 // pred_check
          %p478 = pneg %p170
        $region62: #{tpu_custom_call.1} parent=59 // pred_check_branch
          %480 = sbr.rel (%p478) target = $region64
        $region63: #{tpu_custom_call.1} parent=59 // pred_region
          %s481 = sand.u32 %s155, 1
          %s482 = scalar_lea.sflag [#allocation5], %s481
          %s483 = sand.u32 %s155, 1
          %s484 = scalar_lea.vmem [#allocation6], %s483
          %485 = dma.done %s482, 16
        $region64: #{tpu_custom_call.1} parent=59 // pred_fallthru
          _
      $region60: #{tpu_custom_call.1} parent=5 // pred_fallthru
        _
    $region6: #{tpu_custom_call.1} parent=1 // loop_footer
      %s21 = sadd.s32 1, %s17
    $region7: #{tpu_custom_call.1} parent=1 // loop_footer_branch
      %16 = sbr.rel target = $region3
    $region8: #{tpu_custom_call.1} parent=1 // loop_exit
      _
    %486 = vsyncpa [#allocation4], 1
    %s487 = scalar_lea.sflag [#allocation4], 1
    %488 = vsyncpa %s487, 1
    %489 = vsyncpa [#allocation5], 1
    %s490 = scalar_lea.sflag [#allocation5], 1
    %491 = vsyncpa %s490, 1

</llo_original>
